<compile_context>
chip_gen: v7x
topology: tpu7x:2x2x1
jax: 0.10.0
libtpu: 0.0.40
codegen_flags: <defaults>
</compile_context>

<pallas_src>
import functools

import jax
import jax.numpy as jnp
from jax.experimental import pallas as pl
from jax.experimental.pallas import tpu as pltpu


def linear_add_relu_kernel(x_ref, w_ref, b_ref, x2_ref, o_ref):
    # x_ref:  [TILE_B, IN]   batch tile of x1
    # w_ref:  [IN, OUT]      pre-transposed weight (VMEM-resident across tiles)
    # b_ref:  [1, OUT]       bias (VMEM-resident across tiles)
    # x2_ref: [TILE_B, OUT]  residual input tile
    # o_ref:  [TILE_B, OUT]  output tile (unpadded last dim)
    x = x_ref[...]
    w = w_ref[...]
    y = b_ref[...] + x2_ref[...]
    in_dim = x.shape[1]
    if in_dim <= 8:
        # Tiny contraction: 'in_dim' VPU broadcast-FMAs, skip MXU push/pop.
        for k in range(in_dim):
            y = y + x[:, k:k + 1] * w[k:k + 1, :]
    else:
        y = y + jnp.dot(x, w, preferred_element_type=jnp.float32)
    o_ref[...] = jnp.maximum(y, 0.0).astype(o_ref.dtype)


@functools.partial(jax.jit, static_argnames=("tile_b",))
def model_forward(x1, x2, weight, bias, *, tile_b=8192):
    """weight: [OUT, IN] (PyTorch Linear convention), bias: [OUT], x2: [B, OUT]."""
    B, IN = x1.shape
    OUT = weight.shape[0]

    w_t = weight.T               # [IN, OUT] — one-time tiny transpose, fuses in jit
    b2 = bias.reshape(1, OUT)    # [1, OUT]

    if B <= tile_b:
        # Small / moderate batch: single grid point, block shapes == full array
        # shapes (bypasses the (8,128) rule).  No padding, no slicing.
        return pl.pallas_call(
            linear_add_relu_kernel,
            out_shape=jax.ShapeDtypeStruct((B, OUT), x1.dtype),
            grid=(1,),
            in_specs=[
                pl.BlockSpec((B, IN), lambda i: (0, 0)),
                pl.BlockSpec((IN, OUT), lambda i: (0, 0)),
                pl.BlockSpec((1, OUT), lambda i: (0, 0)),
                pl.BlockSpec((B, OUT), lambda i: (0, 0)),
            ],
            out_specs=pl.BlockSpec((B, OUT), lambda i: (0, 0)),
        )(x1, w_t, b2, x2)

    # Large batch: tile over B only.  Last dims stay at their native sizes
    # (IN / OUT == full array dims), ragged batch handled by Pallas edge-block
    # masking — no wrapper pad / output slice.
    grid = (pl.cdiv(B, tile_b),)
    return pl.pallas_call(
        linear_add_relu_kernel,
        out_shape=jax.ShapeDtypeStruct((B, OUT), x1.dtype),
        grid=grid,
        in_specs=[
            pl.BlockSpec((tile_b, IN), lambda i: (i, 0)),
            pl.BlockSpec((IN, OUT), lambda i: (0, 0)),   # resident across tiles
            pl.BlockSpec((1, OUT), lambda i: (0, 0)),    # resident across tiles
            pl.BlockSpec((tile_b, OUT), lambda i: (i, 0)),
        ],
        out_specs=pl.BlockSpec((tile_b, OUT), lambda i: (i, 0)),
        compiler_params=pltpu.CompilerParams(
            dimension_semantics=("parallel",),
        ),
    )(x1, w_t, b2, x2)


if __name__ == "__main__":
    B, IN, OUT = 2, 3, 4

    key = jax.random.PRNGKey(0)
    k_x1, k_x2, k_w, k_b = jax.random.split(key, 4)

    # Deterministic inputs.  NOTE: the original spec's x2 = randn(2, 3) would
    # not broadcast against the Linear(3, 4) output in PyTorch either; we use
    # the broadcast-compatible shape [B, OUT].
    x1 = jax.random.normal(k_x1, (B, IN), dtype=jnp.float32)
    x2 = jax.random.normal(k_x2, (B, OUT), dtype=jnp.float32)

    # Deterministic Linear(3, 4) parameters (PyTorch shape conventions).
    bound = 1.0 / jnp.sqrt(IN)
    weight = jax.random.uniform(k_w, (OUT, IN), minval=-bound, maxval=bound,
                                dtype=jnp.float32)
    bias = jax.random.uniform(k_b, (OUT,), minval=-bound, maxval=bound,
                              dtype=jnp.float32)

    # --- Model-shape run (single grid point, no padding) ---
    out = model_forward(x1, x2, weight, bias)
    jax.block_until_ready(out)
    ref = jnp.maximum(x1 @ weight.T + bias + x2, 0.0)
    assert out.shape == (B, OUT)
    assert jnp.allclose(out, ref, atol=1e-5, rtol=1e-5)

    # --- Ragged large-batch path check (grid > 1, non-divisible B) ---
    Bl = 1000
    x1l = jax.random.normal(k_x1, (Bl, IN), dtype=jnp.float32)
    x2l = jax.random.normal(k_x2, (Bl, OUT), dtype=jnp.float32)
    outl = model_forward(x1l, x2l, weight, bias, tile_b=256)
    jax.block_until_ready(outl)
    refl = jnp.maximum(x1l @ weight.T + bias + x2l, 0.0)
    assert outl.shape == (Bl, OUT)
    assert jnp.allclose(outl, refl, atol=1e-5, rtol=1e-5)

    print("KERNEL_OK")
</pallas_src>

<mosaic_0001>
module attributes {stable_mosaic.version = 11 : i64} {
  func.func @linear_add_relu_kernel(%arg0: i32, %arg1: memref<2x3xf32, #tpu.memory_space<vmem>>, %arg2: memref<3x4xf32, #tpu.memory_space<vmem>>, %arg3: memref<1x4xf32, #tpu.memory_space<vmem>>, %arg4: memref<2x4xf32, #tpu.memory_space<vmem>>, %arg5: memref<2x4xf32, #tpu.memory_space<vmem>>) attributes {dimension_semantics = [#tpu.dimension_semantics<arbitrary>], iteration_bounds = array<i64: 1>, scalar_prefetch = 0 : i64, scratch_operands = 0 : i64, tpu.core_type = #tpu.core_type<tc>, window_params = [{pipeline_mode = #tpu.pipeline_mode<synchronous>, transform_indices = @transform_0, window_bounds = array<i64: 2, 3>}, {pipeline_mode = #tpu.pipeline_mode<synchronous>, transform_indices = @transform_1, window_bounds = array<i64: 3, 4>}, {pipeline_mode = #tpu.pipeline_mode<synchronous>, transform_indices = @transform_2, window_bounds = array<i64: 1, 4>}, {pipeline_mode = #tpu.pipeline_mode<synchronous>, transform_indices = @transform_3, window_bounds = array<i64: 2, 4>}, {pipeline_mode = #tpu.pipeline_mode<synchronous>, transform_indices = @transform_4, window_bounds = array<i64: 2, 4>}]} {
    %c0 = arith.constant 0 : index
    %c0_0 = arith.constant 0 : index
    %0 = vector.load %arg1[%c0, %c0_0] : memref<2x3xf32, #tpu.memory_space<vmem>>, vector<2x3xf32>
    %c0_1 = arith.constant 0 : index
    %c0_2 = arith.constant 0 : index
    %1 = vector.load %arg2[%c0_1, %c0_2] : memref<3x4xf32, #tpu.memory_space<vmem>>, vector<3x4xf32>
    %c0_3 = arith.constant 0 : index
    %c0_4 = arith.constant 0 : index
    %2 = vector.load %arg3[%c0_3, %c0_4] : memref<1x4xf32, #tpu.memory_space<vmem>>, vector<1x4xf32>
    %c0_5 = arith.constant 0 : index
    %c0_6 = arith.constant 0 : index
    %3 = vector.load %arg4[%c0_5, %c0_6] : memref<2x4xf32, #tpu.memory_space<vmem>>, vector<2x4xf32>
    %4 = vector.broadcast %2 : vector<1x4xf32> to vector<2x4xf32>
    %5 = arith.addf %4, %3 : vector<2x4xf32>
    %6 = vector.extract_strided_slice %0 {offsets = [0, 0], sizes = [2, 1], strides = [1, 1]} : vector<2x3xf32> to vector<2x1xf32>
    %7 = vector.extract_strided_slice %1 {offsets = [0, 0], sizes = [1, 4], strides = [1, 1]} : vector<3x4xf32> to vector<1x4xf32>
    %8 = vector.broadcast %6 : vector<2x1xf32> to vector<2x4xf32>
    %9 = vector.broadcast %7 : vector<1x4xf32> to vector<2x4xf32>
    %10 = arith.mulf %8, %9 : vector<2x4xf32>
    %11 = arith.addf %5, %10 : vector<2x4xf32>
    %12 = vector.extract_strided_slice %0 {offsets = [0, 1], sizes = [2, 1], strides = [1, 1]} : vector<2x3xf32> to vector<2x1xf32>
    %13 = vector.extract_strided_slice %1 {offsets = [1, 0], sizes = [1, 4], strides = [1, 1]} : vector<3x4xf32> to vector<1x4xf32>
    %14 = vector.broadcast %12 : vector<2x1xf32> to vector<2x4xf32>
    %15 = vector.broadcast %13 : vector<1x4xf32> to vector<2x4xf32>
    %16 = arith.mulf %14, %15 : vector<2x4xf32>
    %17 = arith.addf %11, %16 : vector<2x4xf32>
    %18 = vector.extract_strided_slice %0 {offsets = [0, 2], sizes = [2, 1], strides = [1, 1]} : vector<2x3xf32> to vector<2x1xf32>
    %19 = vector.extract_strided_slice %1 {offsets = [2, 0], sizes = [1, 4], strides = [1, 1]} : vector<3x4xf32> to vector<1x4xf32>
    %20 = vector.broadcast %18 : vector<2x1xf32> to vector<2x4xf32>
    %21 = vector.broadcast %19 : vector<1x4xf32> to vector<2x4xf32>
    %22 = arith.mulf %20, %21 : vector<2x4xf32>
    %23 = arith.addf %17, %22 : vector<2x4xf32>
    %cst = arith.constant 0.000000e+00 : f32
    %24 = vector.broadcast %cst : f32 to vector<2x4xf32>
    %25 = arith.maximumf %23, %24 : vector<2x4xf32>
    %c0_7 = arith.constant 0 : index
    %c0_8 = arith.constant 0 : index
    %26 = vector.load %arg5[%c0_7, %c0_8] : memref<2x4xf32, #tpu.memory_space<vmem>>, vector<2x4xf32>
    tpu.vector_store %arg5[%c0_7, %c0_8], %25 {strides = array<i32>} : memref<2x4xf32, #tpu.memory_space<vmem>>, vector<2x4xf32>,
    return
  }
  func.func @transform_0(%arg0: i32) -> (i32, i32) {
    %c0_i32 = arith.constant 0 : i32
    %c0_i32_0 = arith.constant 0 : i32
    %c0_i32_1 = arith.constant 0 : i32
    return %c0_i32, %c0_i32_0 : i32, i32
  }
  func.func @transform_1(%arg0: i32) -> (i32, i32) {
    %c0_i32 = arith.constant 0 : i32
    %c0_i32_0 = arith.constant 0 : i32
    %c0_i32_1 = arith.constant 0 : i32
    return %c0_i32, %c0_i32_0 : i32, i32
  }
  func.func @transform_2(%arg0: i32) -> (i32, i32) {
    %c0_i32 = arith.constant 0 : i32
    %c0_i32_0 = arith.constant 0 : i32
    %c0_i32_1 = arith.constant 0 : i32
    return %c0_i32, %c0_i32_0 : i32, i32
  }
  func.func @transform_3(%arg0: i32) -> (i32, i32) {
    %c0_i32 = arith.constant 0 : i32
    %c0_i32_0 = arith.constant 0 : i32
    %c0_i32_1 = arith.constant 0 : i32
    return %c0_i32, %c0_i32_0 : i32, i32
  }
  func.func @transform_4(%arg0: i32) -> (i32, i32) {
    %c0_i32 = arith.constant 0 : i32
    %c0_i32_0 = arith.constant 0 : i32
    %c0_i32_1 = arith.constant 0 : i32
    return %c0_i32, %c0_i32_0 : i32, i32
  }
}

</mosaic_0001>

<llo_original>
// kernel: model_forward.1
$region0: #{model_forward.1}
  #allocation0 [shape = 'u32[]', space=smem, size = 0x4, offset = 0x4, fixed_abs, tag = 'smem constant byte address 0x4 - core index']
  #allocation1 [shape = 'u32[144,128]{1,0:T(1,128)}', space=vmem, size = 0x12000, scoped, tag = 'internal scratch']
  %s0 = inlined_call_operand.vmem [shape: f32[2,3], index: 0, kind: input, shape index: {}]
  %s1 = inlined_call_operand.vmem [shape: f32[3,4], index: 1, kind: input, shape index: {}]
  %s2 = inlined_call_operand.vmem [shape: f32[1,4], index: 2, kind: input, shape index: {}]
  %s3 = inlined_call_operand.vmem [shape: f32[2,4], index: 3, kind: input, shape index: {}]
  %s4 = inlined_call_operand.hbm [shape: f32[2,4], index: 4, kind: output, shape index: {}]
  %s5 = sld [smem:[#allocation0]]
  $region26: #{model_forward.1} parent=0
    _
  %s7 = ssub.s32 1, %s5
  %s8 = scalar_select 0, %s7, %s5
  $region1: #{model_forward.1} parent=0
    #allocation2 [shape = 'u8[1024]{0}', space=vmem, size = 0x400, scoped, tag = 'output window, operand 0, single buffered']
    #allocation3 [shape = 's32[1]{0}', space=sflag, size = 0x4, scoped, tag = 'scoped memory for model_forward.1']
    %9 = vsyncpa [#allocation3], 0
    // Predicated region
    $region2: #{model_forward.1} parent=1 // pred_check
      _
    $region3: #{model_forward.1} parent=1 // pred_check_branch
      %11 = sbr.rel (0) target = $region5
    $region4: #{model_forward.1} parent=1 // pred_region
      _
    $region5: #{model_forward.1} parent=1 // pred_fallthru
      _
    // Predicated region
    $region6: #{model_forward.1} parent=1 // pred_check
      _
    $region7: #{model_forward.1} parent=1 // pred_check_branch
      %13 = sbr.rel (0) target = $region9
    $region8: #{model_forward.1} parent=1 // pred_region
      _
    $region9: #{model_forward.1} parent=1 // pred_fallthru
      _
    // Predicated region
    $region10: #{model_forward.1} parent=1 // pred_check
      _
    $region11: #{model_forward.1} parent=1 // pred_check_branch
      %15 = sbr.rel (0) target = $region13
    $region12: #{model_forward.1} parent=1 // pred_region
      _
    $region13: #{model_forward.1} parent=1 // pred_fallthru
      _
    // Predicated region
    $region14: #{model_forward.1} parent=1 // pred_check
      _
    $region15: #{model_forward.1} parent=1 // pred_check_branch
      %17 = sbr.rel (0) target = $region17
    $region16: #{model_forward.1} parent=1 // pred_region
      _
    $region17: #{model_forward.1} parent=1 // pred_fallthru
      _
    %v18 = vld [vmem:[%s0] sm:$0x3]
    %v19 = vld [vmem:[%s1] sm:$0x7]
    %v20 = vld [vmem:[%s2] sm:$0x1]
    %v21 = vld [vmem:[%s3] sm:$0x3]
    %v23 = vlaneseq
    %v24 = vshrl.u32 %v23, 7
    %v25 = vsub.s32 0, %v24
    %v26 = vrot.slane %v20, %v25
    %v28 = vadd.f32 %v26, %v21
    %30 = vset.pattern.permute.xlu0 0
    %31 = vperm.xlu0 %30, %v18
    %v32 = vpop.permute.xlu0 %31
    %v34 = vlaneseq
    %v35 = vshrl.u32 %v34, 7
    %v36 = vsub.s32 0, %v35
    %v37 = vrot.slane %v19, %v36
    %v38 = vmul.f32 %v32, %v37
    %v39 = vadd.f32 %v28, %v38
    %40 = vset.pattern.permute.xlu0 1
    %41 = vperm.xlu0 %40, %v18
    %v42 = vpop.permute.xlu0 %41
    %v44 = vlaneseq
    %v45 = vshrl.u32 %v44, 7
    %v46 = vsub.s32 1, %v45
    %v47 = vrot.slane %v19, %v46
    %v48 = vmul.f32 %v42, %v47
    %v49 = vadd.f32 %v39, %v48
    %50 = vset.pattern.permute.xlu0 2
    %51 = vperm.xlu0 %50, %v18
    %v52 = vpop.permute.xlu0 %51
    %v54 = vlaneseq
    %v55 = vshrl.u32 %v54, 7
    %v56 = vsub.s32 2, %v55
    %v57 = vrot.slane %v19, %v56
    %v58 = vmul.f32 %v52, %v57
    %v59 = vadd.f32 %v49, %v58
    %v60 = vmax.f32 %v59, 0.0
    %vm61 = vcmask 25600
    %62 = vst.msk [vmem:[#allocation2] sm:$0x3] %vm61, %v60
    // Predicated region
    $region18: #{model_forward.1} parent=1 // pred_check
      _
    $region19: #{model_forward.1} parent=1 // pred_check_branch
      %64 = sbr.rel (0) target = $region21
    $region20: #{model_forward.1} parent=1 // pred_region
      %s66 = ssub.s32 32, 32
      %67 = vsyncadd [#allocation3], %s66
      %s69 = sshll.u32 [#allocation2], 4
      %s70 = int_to_ptr.vmem [resolvable:$true] %s69
      %72 = dma.vmem_to_hbm [thread:$0]  %s70, 32, %s4, [#allocation3]
    $region21: #{model_forward.1} parent=1 // pred_fallthru
      _
    // Predicated region
    $region22: #{model_forward.1} parent=1 // pred_check
      _
    $region23: #{model_forward.1} parent=1 // pred_check_branch
      %74 = sbr.rel (0) target = $region25
    $region24: #{model_forward.1} parent=1 // pred_region
      %75 = dma.done [#allocation3], 32
    $region25: #{model_forward.1} parent=1 // pred_fallthru
      _
    %76 = vsyncpa [#allocation3], 1

</llo_original>
